<compile_context>
chip_gen: v7x
topology: tpu7x:2x2x1
jax: 0.10.0
libtpu: 0.0.40
codegen_flags: <defaults>
</compile_context>

<pallas_src>
import functools

import jax
import jax.numpy as jnp
from jax.experimental import pallas as pl
from jax.experimental.pallas import tpu as pltpu

_MIB = 1024 * 1024


def _mean_pool_kernel(eps, x_ref, m_ref, out_ref):
    """One grid step handles a (block_b, block_h) output tile.

    x_ref   : (TB, S, TH)  last_hidden_state tile (bf16 or f32)
    m_ref   : (TB, 1, S)   attention mask tile, f32, S on the lane axis
    out_ref : (TB, TH)     pooled output tile, f32 (sublane/lane dense)
    """
    x = x_ref[...]                                   # (TB, S, TH)
    m = m_ref[...]                                   # (TB, 1, S), f32

    # Fused mask-multiply + sum over S as one batched MXU matmul, f32 accumulation:
    #   summed[b, 0, :] = sum_s m[b, 0, s] * x[b, s, :]
    summed = jnp.einsum(
        "bqs,bsh->bqh",
        m.astype(x.dtype), x,
        preferred_element_type=jnp.float32)[:, 0, :]          # (TB, TH) f32

    # Denominator: lane reduce over S, clamped at epsilon, all in f32.
    denom = jnp.maximum(jnp.sum(m, axis=2), eps)              # (TB, 1) f32

    out_ref[...] = (summed / denom).astype(out_ref.dtype)


def _vmem_budgets():
    """Return (per-tile x budget, scoped VMEM limit), gated on the chip generation."""
    try:
        cap = pltpu.get_tpu_info().vmem_capacity_bytes
    except Exception:
        cap = None
    if cap is not None and cap > 64 * _MIB:
        # v5e / v6e: 128 MiB physical VMEM -> large tiles, generous scoped limit.
        return 20 * _MIB, 64 * _MIB
    # v7x-class (64 MiB physical / 32 MiB default scoped) or unknown: stay conservative.
    return 14 * _MIB, 48 * _MIB


def _choose_tiling(B, S, H, itemsize, tile_budget_bytes):
    """Pick (block_b, block_h) honoring the (8, 128) block rules and VMEM budget."""
    # H candidates: full H is always legal; multiples of 128 that divide H keep
    # lane-dense blocks with no edge padding.
    h_cands = [H]
    if H % 128 == 0:
        h_cands = [h for h in range(128, H + 1, 128) if H % h == 0]
    # B candidates: divisors of B satisfying the sublane rule for the (block_b, block_h)
    # output block and the (block_b, 1, S) mask block: block_b % 8 == 0 or block_b == B.
    b_cands = [b for b in range(1, B + 1) if B % b == 0 and (b % 8 == 0 or b == B)]

    floor = min(tile_budget_bytes, 2 * _MIB)   # keep per-step DMA >> 0.35 us step overhead

    def score(bb, bh):
        tile = bb * S * bh * itemsize
        grid = (B // bb) * (H // bh)
        fits = tile <= tile_budget_bytes
        return (
            fits,                              # double-buffered x tile fits the VMEM budget
            fits and tile >= floor,            # per-step bytes large enough to hide step overhead
            grid % 2 == 0 and grid >= 4,       # even grid >= 4: balances v7x's 2 TCs, primes pipeline
            grid >= 2,
            tile if fits else -tile,           # then: biggest fitting tile (smallest if none fit)
        )

    return max(((b, h) for b in b_cands for h in h_cands), key=lambda t: score(*t))


def mean_pooling(last_hidden_state, attention_mask, epsilon=1e-9,
                 stream_dtype=jnp.bfloat16, block_b=None, block_h=None):
    """last_hidden_state: (B, S, H) float; attention_mask: (B, S) -> (B, H) f32."""
    B, S, H = last_hidden_state.shape

    x = last_hidden_state
    if stream_dtype is not None and x.dtype != stream_dtype:
        # HBM-bound kernel: stream the big tensor at half width; accumulation stays f32.
        x = x.astype(stream_dtype)

    mask3 = attention_mask.astype(jnp.float32).reshape(B, 1, S)   # S lane-major

    tile_budget, vmem_limit = _vmem_budgets()
    if block_b is None or block_h is None:
        bb, bh = _choose_tiling(B, S, H, x.dtype.itemsize, tile_budget)
        block_b = block_b or bb
        block_h = block_h or bh
    assert B % block_b == 0 and H % block_h == 0, (B, block_b, H, block_h)

    grid = (B // block_b, H // block_h)

    grid_spec = pltpu.PrefetchScalarGridSpec(
        num_scalar_prefetch=0,
        grid=grid,
        in_specs=[
            pl.BlockSpec((block_b, S, block_h), lambda i, j: (i, 0, j)),   # x tile
            pl.BlockSpec((block_b, 1, S), lambda i, j: (i, 0, 0)),         # mask tile
        ],
        out_specs=pl.BlockSpec((block_b, block_h), lambda i, j: (i, j)),
    )

    cost = pl.CostEstimate(
        flops=2 * B * S * H,
        transcendentals=0,
        bytes_accessed=B * S * H * x.dtype.itemsize + B * S * 4 + B * H * 4,
    )

    out = pl.pallas_call(
        functools.partial(_mean_pool_kernel, float(epsilon)),
        out_shape=jax.ShapeDtypeStruct((B, H), jnp.float32),
        grid_spec=grid_spec,
        cost_estimate=cost,
        compiler_params=pltpu.CompilerParams(
            dimension_semantics=("parallel", "parallel"),
            vmem_limit_bytes=vmem_limit,
        ),
    )(x, mask3)

    return out


def mean_pooling_reference(last_hidden_state, attention_mask, epsilon=1e-9):
    """Pure-JAX reference matching the PyTorch MeanPooling forward."""
    x = last_hidden_state.astype(jnp.float32)
    m = attention_mask.astype(jnp.float32)[..., None]             # (B, S, 1)
    summed = jnp.sum(x * m, axis=1)                               # (B, H)
    denom = jnp.maximum(jnp.sum(m, axis=1), epsilon)              # (B, 1)
    return summed / denom


if __name__ == "__main__":
    B, S, H = 4, 8, 32

    key = jax.random.PRNGKey(0)
    last_hidden_state = jax.random.normal(key, (B, S, H), jnp.float32)
    # Variable-length sequences: trailing positions are padding (mask == 0).
    lens = jnp.array([8, 6, 3, 5], dtype=jnp.int32)
    attention_mask = (jnp.arange(S)[None, :] < lens[:, None]).astype(jnp.int32)

    ref = mean_pooling_reference(last_hidden_state, attention_mask)

    # Default path: bf16 streaming of last_hidden_state, f32 accumulation/clamp/divide.
    out = jax.block_until_ready(mean_pooling(last_hidden_state, attention_mask))
    assert out.shape == (B, H) and out.dtype == jnp.float32
    assert jnp.allclose(out, ref, atol=3e-2, rtol=3e-2), (out, ref)

    # Full-f32 streaming path: tight tolerance against the reference.
    out_f32 = jax.block_until_ready(
        mean_pooling(last_hidden_state, attention_mask, stream_dtype=None))
    assert jnp.allclose(out_f32, ref, atol=1e-5, rtol=1e-5), (out_f32, ref)

    # Native-bf16 input path (no wrapper cast needed).
    x_bf16 = last_hidden_state.astype(jnp.bfloat16)
    out_bf16 = jax.block_until_ready(mean_pooling(x_bf16, attention_mask))
    ref_bf16 = mean_pooling_reference(x_bf16, attention_mask)
    assert jnp.allclose(out_bf16, ref_bf16, atol=1e-5, rtol=1e-5), (out_bf16, ref_bf16)

    print("KERNEL_OK")
</pallas_src>

<mosaic_0001>
module attributes {stable_mosaic.version = 11 : i64} {
  func.func @_mean_pool_kernel(%arg0: i32, %arg1: i32, %arg2: memref<4x8x32xbf16, #tpu.memory_space<vmem>>, %arg3: memref<4x1x8xf32, #tpu.memory_space<vmem>>, %arg4: memref<4x32xf32, #tpu.memory_space<vmem>>) attributes {dimension_semantics = [#tpu.dimension_semantics<parallel>, #tpu.dimension_semantics<parallel>], iteration_bounds = array<i64: 1, 1>, scalar_prefetch = 0 : i64, scratch_operands = 0 : i64, tpu.core_type = #tpu.core_type<tc>, window_params = [{transform_indices = @transform_0, window_bounds = array<i64: 4, 8, 32>}, {transform_indices = @transform_1, window_bounds = array<i64: 4, 1, 8>}, {transform_indices = @transform_2, window_bounds = array<i64: 4, 32>}]} {
    %c0 = arith.constant 0 : index
    %c0_0 = arith.constant 0 : index
    %c0_1 = arith.constant 0 : index
    %0 = vector.load %arg2[%c0, %c0_0, %c0_1] : memref<4x8x32xbf16, #tpu.memory_space<vmem>>, vector<4x8x32xbf16>
    %c0_2 = arith.constant 0 : index
    %c0_3 = arith.constant 0 : index
    %c0_4 = arith.constant 0 : index
    %1 = vector.load %arg3[%c0_2, %c0_3, %c0_4] : memref<4x1x8xf32, #tpu.memory_space<vmem>>, vector<4x1x8xf32>
    %2 = arith.truncf %1 : vector<4x1x8xf32> to vector<4x1x8xbf16>
    "tpu.trace_start"() <{level = 10 : i32, message = "bqs,bsh->bqh"}> : () -> ()
    %cst = arith.constant dense<0.000000e+00> : vector<4x1x32xf32>
    %3 = tpu.matmul %2, %0, %cst {dimension_numbers = #tpu.dot_dimension_numbers<[2], [1], [1], [2], [0, 0, 0, 1, 1, 2], [0], [0]>} : vector<4x1x8xbf16>, vector<4x8x32xbf16>, vector<4x1x32xf32> -> vector<4x1x32xf32>
    "tpu.trace_stop"() : () -> ()
    %4 = vector.shape_cast %3 : vector<4x1x32xf32> to vector<4x32xf32>
    %cst_5 = arith.constant dense<0.000000e+00> : vector<4x1xf32>
    %5 = vector.multi_reduction <add>, %1, %cst_5 [2] : vector<4x1x8xf32> to vector<4x1xf32>
    %cst_6 = arith.constant 9.99999971E-10 : f32
    %6 = vector.broadcast %cst_6 : f32 to vector<4x1xf32>
    %7 = arith.maximumf %5, %6 : vector<4x1xf32>
    %8 = vector.broadcast %7 : vector<4x1xf32> to vector<4x32xf32>
    %9 = arith.divf %4, %8 : vector<4x32xf32>
    %c0_7 = arith.constant 0 : index
    %c0_8 = arith.constant 0 : index
    %10 = vector.load %arg4[%c0_7, %c0_8] : memref<4x32xf32, #tpu.memory_space<vmem>>, vector<4x32xf32>
    tpu.vector_store %arg4[%c0_7, %c0_8], %9 {strides = array<i32>} : memref<4x32xf32, #tpu.memory_space<vmem>>, vector<4x32xf32>,
    return
  }
  func.func @transform_0(%arg0: i32, %arg1: i32) -> (i32, i32, i32) {
    %c0_i32 = arith.constant 0 : i32
    %c0_i32_0 = arith.constant 0 : i32
    return %arg0, %c0_i32, %arg1 : i32, i32, i32
  }
  func.func @transform_1(%arg0: i32, %arg1: i32) -> (i32, i32, i32) {
    %c0_i32 = arith.constant 0 : i32
    %c0_i32_0 = arith.constant 0 : i32
    %c0_i32_1 = arith.constant 0 : i32
    return %arg0, %c0_i32, %c0_i32_0 : i32, i32, i32
  }
  func.func @transform_2(%arg0: i32, %arg1: i32) -> (i32, i32) {
    %c0_i32 = arith.constant 0 : i32
    return %arg0, %arg1 : i32, i32
  }
}

</mosaic_0001>

<llo_original>
// kernel: tpu_custom_call.1
$region0: #{tpu_custom_call.1}
  #allocation0 [shape = 'u32[]', space=smem, size = 0x4, offset = 0x4, fixed_abs, tag = 'smem constant byte address 0x4 - core index']
  #allocation1 [shape = 'u32[144,128]{1,0:T(1,128)}', space=vmem, size = 0x12000, scoped, tag = 'internal scratch']
  %s0 = inlined_call_operand.hbm [shape: bf16[4,8,32], index: 0, kind: input, shape index: {}]
  %s1 = inlined_call_operand.hbm [shape: f32[4,1,8], index: 1, kind: input, shape index: {}]
  %s2 = inlined_call_operand.hbm [shape: f32[4,32], index: 2, kind: output, shape index: {}]
  %s3 = sld [smem:[#allocation0]]
  $region26: #{tpu_custom_call.1} parent=0
    _
  %s5 = ssub.s32 1, %s3
  %s6 = scalar_select 0, %s5, %s3
  $region1: #{tpu_custom_call.1} parent=0
    #allocation2 [shape = 'u8[8192]{0}', space=vmem, size = 0x2000, scoped, tag = 'input window, operand 0, single buffered']
    #allocation3 [shape = 's32[1]{0}', space=sflag, size = 0x4, scoped, tag = 'scoped memory for tpu_custom_call.1']
    #allocation4 [shape = 's32[1]{0}', space=sflag, size = 0x4, scoped, tag = 'scoped memory for tpu_custom_call.1']
    #allocation5 [shape = 'u8[2048]{0}', space=vmem, size = 0x800, scoped, tag = 'input window, operand 1, single buffered']
    #allocation6 [shape = 's32[1]{0}', space=sflag, size = 0x4, scoped, tag = 'scoped memory for tpu_custom_call.1']
    #allocation7 [shape = 'u8[2048]{0}', space=vmem, size = 0x800, scoped, tag = 'output window, operand 0, single buffered']
    %7 = vsyncpa [#allocation3], 0
    %8 = vsyncpa [#allocation6], 0
    %9 = vsyncpa [#allocation4], 0
    // Predicated region
    $region2: #{tpu_custom_call.1} parent=1 // pred_check
      _
    $region3: #{tpu_custom_call.1} parent=1 // pred_check_branch
      %11 = sbr.rel (0) target = $region5
    $region4: #{tpu_custom_call.1} parent=1 // pred_region
      %s13 = ssub.s32 256, 256
      %14 = vsyncadd [#allocation3], %s13
      %s15 = sshll.u32 [#allocation2], 4
      %s16 = int_to_ptr.vmem [resolvable:$true] %s15
      %21 = dma.hbm_to_vmem [thread:$0]  %s0, 256, %s16, [#allocation3], 64, 64, 4
    $region5: #{tpu_custom_call.1} parent=1 // pred_fallthru
      _
    // Predicated region
    $region6: #{tpu_custom_call.1} parent=1 // pred_check
      _
    $region7: #{tpu_custom_call.1} parent=1 // pred_check_branch
      %23 = sbr.rel (0) target = $region9
    $region8: #{tpu_custom_call.1} parent=1 // pred_region
      %s25 = ssub.s32 64, 64
      %26 = vsyncadd [#allocation6], %s25
      %s27 = sshll.u32 [#allocation5], 4
      %s28 = int_to_ptr.vmem [resolvable:$true] %s27
      %33 = dma.hbm_to_vmem [thread:$0]  %s1, 64, %s28, [#allocation6], 16, 16, 1
    $region9: #{tpu_custom_call.1} parent=1 // pred_fallthru
      _
    // Predicated region
    $region10: #{tpu_custom_call.1} parent=1 // pred_check
      _
    $region11: #{tpu_custom_call.1} parent=1 // pred_check_branch
      %35 = sbr.rel (0) target = $region13
    $region12: #{tpu_custom_call.1} parent=1 // pred_region
      %36 = dma.done [#allocation3], 256
    $region13: #{tpu_custom_call.1} parent=1 // pred_fallthru
      _
    // Predicated region
    $region14: #{tpu_custom_call.1} parent=1 // pred_check
      _
    $region15: #{tpu_custom_call.1} parent=1 // pred_check_branch
      %38 = sbr.rel (0) target = $region17
    $region16: #{tpu_custom_call.1} parent=1 // pred_region
      %39 = dma.done [#allocation6], 64
    $region17: #{tpu_custom_call.1} parent=1 // pred_fallthru
      _
    %v41 = vld [vmem:[#allocation2] sm:$0xf]
    %v42 = vld [vmem:[#allocation2 + $0x4] sm:$0xf]
    %v43 = vld [vmem:[#allocation2 + $0x8] sm:$0xf]
    %v44 = vld [vmem:[#allocation2 + $0xc] sm:$0xf]
    %v45 = vld [vmem:[#allocation5] sm:$0x1]
    %v46 = vld [vmem:[#allocation5 + $0x1] sm:$0x1]
    %v47 = vld [vmem:[#allocation5 + $0x2] sm:$0x1]
    %v48 = vld [vmem:[#allocation5 + $0x3] sm:$0x1]
    %v49 = vpack.c.bf16 %v45, %v45
    %v50 = vpack.c.bf16 %v46, %v46
    %v51 = vpack.c.bf16 %v47, %v47
    %v52 = vpack.c.bf16 %v48, %v48
    %vm53 = vcmask 64512
    %v55 = vsel %vm53, %v49, 0
    %vm57 = vcmask 1043456
    %v59 = vsel %vm57, %v41, 0
    %61 = vmatprep.subr.bf16.mxu0 0
    %62 = vmatpush1.bf16.msra.mxu0 %v59
    %63 = vmatprep.subr.bf16.mxu0 0
    %64 = vmatpush1.bf16.msra.mxu0 0
    %65 = vmatprep.subr.bf16.mxu0 0
    %66 = vmatpush1.bf16.msra.mxu0 0
    %67 = vmatprep.subr.bf16.mxu0 0
    %68 = vmatpush1.bf16.msra.mxu0 0
    %69 = vmatprep.subr.bf16.mxu0 0
    %70 = vmatpush1.bf16.msra.mxu0 0
    %71 = vmatprep.subr.bf16.mxu0 0
    %72 = vmatpush1.bf16.msra.mxu0 0
    %73 = vmatprep.subr.bf16.mxu0 0
    %74 = vmatpush1.bf16.msra.mxu0 0
    %75 = vmatprep.subr.bf16.mxu0 0
    %76 = vmatpush1.bf16.msra.mxu0 0
    %77 = vmatprep.subr.bf16.mxu0 0
    %78 = vmatpush1.bf16.msra.mxu0 0
    %79 = vmatprep.subr.bf16.mxu0 0
    %80 = vmatpush1.bf16.msra.mxu0 0
    %81 = vmatprep.subr.bf16.mxu0 0
    %82 = vmatpush1.bf16.msra.mxu0 0
    %83 = vmatprep.subr.bf16.mxu0 0
    %84 = vmatpush1.bf16.msra.mxu0 0
    %85 = vmatprep.subr.bf16.mxu0 0
    %86 = vmatpush1.bf16.msra.mxu0 0
    %87 = vmatprep.subr.bf16.mxu0 0
    %88 = vmatpush1.bf16.msra.mxu0 0
    %89 = vmatprep.subr.bf16.mxu0 0
    %90 = vmatpush1.bf16.msra.mxu0 0
    %91 = vmatprep.subr.bf16.mxu0 0
    %92 = vmatpush1.bf16.msra.mxu0 0
    %93 = vmatprep.mubr.bf16.mxu0 0
    %94 = vmatmul.mubr.bf16.gmra.mrb[0].mxu0 %v55
    %v95 = vpop.f32.mrb[0].mxu0
    %v96 = vadd.f32 0.0, %v95
    %v97 = vpop.f32.mrb[0].mxu0
    %v98 = vpop.f32.mrb[0].mxu0
    %v99 = vpop.f32.mrb[0].mxu0
    %100 = vdwg.mxu0
    %v102 = vsel %vm53, %v50, 0
    %v105 = vsel %vm57, %v42, 0
    %107 = vmatprep.subr.bf16.mxu0 0
    %108 = vmatpush1.bf16.msra.mxu0 %v105
    %109 = vmatprep.subr.bf16.mxu0 0
    %110 = vmatpush1.bf16.msra.mxu0 0
    %111 = vmatprep.subr.bf16.mxu0 0
    %112 = vmatpush1.bf16.msra.mxu0 0
    %113 = vmatprep.subr.bf16.mxu0 0
    %114 = vmatpush1.bf16.msra.mxu0 0
    %115 = vmatprep.subr.bf16.mxu0 0
    %116 = vmatpush1.bf16.msra.mxu0 0
    %117 = vmatprep.subr.bf16.mxu0 0
    %118 = vmatpush1.bf16.msra.mxu0 0
    %119 = vmatprep.subr.bf16.mxu0 0
    %120 = vmatpush1.bf16.msra.mxu0 0
    %121 = vmatprep.subr.bf16.mxu0 0
    %122 = vmatpush1.bf16.msra.mxu0 0
    %123 = vmatprep.subr.bf16.mxu0 0
    %124 = vmatpush1.bf16.msra.mxu0 0
    %125 = vmatprep.subr.bf16.mxu0 0
    %126 = vmatpush1.bf16.msra.mxu0 0
    %127 = vmatprep.subr.bf16.mxu0 0
    %128 = vmatpush1.bf16.msra.mxu0 0
    %129 = vmatprep.subr.bf16.mxu0 0
    %130 = vmatpush1.bf16.msra.mxu0 0
    %131 = vmatprep.subr.bf16.mxu0 0
    %132 = vmatpush1.bf16.msra.mxu0 0
    %133 = vmatprep.subr.bf16.mxu0 0
    %134 = vmatpush1.bf16.msra.mxu0 0
    %135 = vmatprep.subr.bf16.mxu0 0
    %136 = vmatpush1.bf16.msra.mxu0 0
    %137 = vmatprep.subr.bf16.mxu0 0
    %138 = vmatpush1.bf16.msra.mxu0 0
    %139 = vmatprep.mubr.bf16.mxu0 0
    %140 = vmatmul.mubr.bf16.gmra.mrb[0].mxu0 %v102
    %v141 = vpop.f32.mrb[0].mxu0
    %v142 = vadd.f32 0.0, %v141
    %v143 = vpop.f32.mrb[0].mxu0
    %v144 = vpop.f32.mrb[0].mxu0
    %v145 = vpop.f32.mrb[0].mxu0
    %146 = vdwg.mxu0
    %v148 = vsel %vm53, %v51, 0
    %v151 = vsel %vm57, %v43, 0
    %153 = vmatprep.subr.bf16.mxu0 0
    %154 = vmatpush1.bf16.msra.mxu0 %v151
    %155 = vmatprep.subr.bf16.mxu0 0
    %156 = vmatpush1.bf16.msra.mxu0 0
    %157 = vmatprep.subr.bf16.mxu0 0
    %158 = vmatpush1.bf16.msra.mxu0 0
    %159 = vmatprep.subr.bf16.mxu0 0
    %160 = vmatpush1.bf16.msra.mxu0 0
    %161 = vmatprep.subr.bf16.mxu0 0
    %162 = vmatpush1.bf16.msra.mxu0 0
    %163 = vmatprep.subr.bf16.mxu0 0
    %164 = vmatpush1.bf16.msra.mxu0 0
    %165 = vmatprep.subr.bf16.mxu0 0
    %166 = vmatpush1.bf16.msra.mxu0 0
    %167 = vmatprep.subr.bf16.mxu0 0
    %168 = vmatpush1.bf16.msra.mxu0 0
    %169 = vmatprep.subr.bf16.mxu0 0
    %170 = vmatpush1.bf16.msra.mxu0 0
    %171 = vmatprep.subr.bf16.mxu0 0
    %172 = vmatpush1.bf16.msra.mxu0 0
    %173 = vmatprep.subr.bf16.mxu0 0
    %174 = vmatpush1.bf16.msra.mxu0 0
    %175 = vmatprep.subr.bf16.mxu0 0
    %176 = vmatpush1.bf16.msra.mxu0 0
    %177 = vmatprep.subr.bf16.mxu0 0
    %178 = vmatpush1.bf16.msra.mxu0 0
    %179 = vmatprep.subr.bf16.mxu0 0
    %180 = vmatpush1.bf16.msra.mxu0 0
    %181 = vmatprep.subr.bf16.mxu0 0
    %182 = vmatpush1.bf16.msra.mxu0 0
    %183 = vmatprep.subr.bf16.mxu0 0
    %184 = vmatpush1.bf16.msra.mxu0 0
    %185 = vmatprep.mubr.bf16.mxu0 0
    %186 = vmatmul.mubr.bf16.gmra.mrb[0].mxu0 %v148
    %v187 = vpop.f32.mrb[0].mxu0
    %v188 = vadd.f32 0.0, %v187
    %v189 = vpop.f32.mrb[0].mxu0
    %v190 = vpop.f32.mrb[0].mxu0
    %v191 = vpop.f32.mrb[0].mxu0
    %192 = vdwg.mxu0
    %v194 = vsel %vm53, %v52, 0
    %v197 = vsel %vm57, %v44, 0
    %199 = vmatprep.subr.bf16.mxu0 0
    %200 = vmatpush1.bf16.msra.mxu0 %v197
    %201 = vmatprep.subr.bf16.mxu0 0
    %202 = vmatpush1.bf16.msra.mxu0 0
    %203 = vmatprep.subr.bf16.mxu0 0
    %204 = vmatpush1.bf16.msra.mxu0 0
    %205 = vmatprep.subr.bf16.mxu0 0
    %206 = vmatpush1.bf16.msra.mxu0 0
    %207 = vmatprep.subr.bf16.mxu0 0
    %208 = vmatpush1.bf16.msra.mxu0 0
    %209 = vmatprep.subr.bf16.mxu0 0
    %210 = vmatpush1.bf16.msra.mxu0 0
    %211 = vmatprep.subr.bf16.mxu0 0
    %212 = vmatpush1.bf16.msra.mxu0 0
    %213 = vmatprep.subr.bf16.mxu0 0
    %214 = vmatpush1.bf16.msra.mxu0 0
    %215 = vmatprep.subr.bf16.mxu0 0
    %216 = vmatpush1.bf16.msra.mxu0 0
    %217 = vmatprep.subr.bf16.mxu0 0
    %218 = vmatpush1.bf16.msra.mxu0 0
    %219 = vmatprep.subr.bf16.mxu0 0
    %220 = vmatpush1.bf16.msra.mxu0 0
    %221 = vmatprep.subr.bf16.mxu0 0
    %222 = vmatpush1.bf16.msra.mxu0 0
    %223 = vmatprep.subr.bf16.mxu0 0
    %224 = vmatpush1.bf16.msra.mxu0 0
    %225 = vmatprep.subr.bf16.mxu0 0
    %226 = vmatpush1.bf16.msra.mxu0 0
    %227 = vmatprep.subr.bf16.mxu0 0
    %228 = vmatpush1.bf16.msra.mxu0 0
    %229 = vmatprep.subr.bf16.mxu0 0
    %230 = vmatpush1.bf16.msra.mxu0 0
    %231 = vmatprep.mubr.bf16.mxu0 0
    %232 = vmatmul.mubr.bf16.gmra.mrb[0].mxu0 %v194
    %v233 = vpop.f32.mrb[0].mxu0
    %v234 = vadd.f32 0.0, %v233
    %v235 = vpop.f32.mrb[0].mxu0
    %v236 = vpop.f32.mrb[0].mxu0
    %v237 = vpop.f32.mrb[0].mxu0
    %238 = vdwg.mxu0
    %vm239 = vcmask 57344
    %v240 = vsel %vm239, %v45, 0.0
    %241 = vadd.xlane.f32.xlu0 %v240
    %v242 = vpop.xlane.xlu0 %241
    %v243 = vsel %vm239, %v46, 0.0
    %244 = vadd.xlane.f32.xlu0 %v243
    %v245 = vpop.xlane.xlu0 %244
    %v246 = vsel %vm239, %v47, 0.0
    %247 = vadd.xlane.f32.xlu0 %v246
    %v248 = vpop.xlane.xlu0 %247
    %v249 = vsel %vm239, %v48, 0.0
    %250 = vadd.xlane.f32.xlu0 %v249
    %v251 = vpop.xlane.xlu0 %250
    %v252 = vmax.f32 %v242, 1e-09
    %v253 = vmax.f32 %v245, 1e-09
    %v254 = vmax.f32 %v248, 1e-09
    %v255 = vmax.f32 %v251, 1e-09
    %v256 = vlaneseq
    %v257 = vshrl.u32 %v256, 7
    %v258 = vsub.s32 0, %v257
    %v259 = vrot.slane %v252, %v258
    %v260 = vlaneseq
    %v261 = vshrl.u32 %v260, 7
    %v262 = vsub.s32 0, %v261
    %v263 = vrot.slane %v253, %v262
    %v264 = vlaneseq
    %v265 = vshrl.u32 %v264, 7
    %v266 = vsub.s32 0, %v265
    %v267 = vrot.slane %v254, %v266
    %v268 = vlaneseq
    %v269 = vshrl.u32 %v268, 7
    %v270 = vsub.s32 0, %v269
    %v271 = vrot.slane %v255, %v270
    %v272 = vrcp.pop %v259
    %v273 = vmul.f32 %v96, %v272
    %v274 = vrcp.pop %v263
    %v275 = vmul.f32 %v142, %v274
    %v276 = vrcp.pop %v267
    %v277 = vmul.f32 %v188, %v276
    %v278 = vrcp.pop %v271
    %v279 = vmul.f32 %v234, %v278
    %v284 = vrot.slane %v275, 7
    %vm285 = vcmask 1041409
    %v286 = vsel %vm285, %v284, %v273
    %v287 = vrot.slane %v277, 6
    %vm288 = vcmask 1042434
    %v289 = vsel %vm288, %v287, %v286
    %v290 = vrot.slane %v279, 5
    %vm291 = vcmask 1043459
    %v292 = vsel %vm291, %v290, %v289
    %vm294 = vcmask 257024
    %295 = vst.msk [vmem:[#allocation7] sm:$0xf] %vm294, %v292
    // Predicated region
    $region18: #{tpu_custom_call.1} parent=1 // pred_check
      _
    $region19: #{tpu_custom_call.1} parent=1 // pred_check_branch
      %297 = sbr.rel (0) target = $region21
    $region20: #{tpu_custom_call.1} parent=1 // pred_region
      %s299 = ssub.s32 64, 64
      %300 = vsyncadd [#allocation4], %s299
      %s302 = sshll.u32 [#allocation7], 4
      %s303 = int_to_ptr.vmem [resolvable:$true] %s302
      %305 = dma.vmem_to_hbm [thread:$0]  %s303, 64, %s2, [#allocation4]
    $region21: #{tpu_custom_call.1} parent=1 // pred_fallthru
      _
    // Predicated region
    $region22: #{tpu_custom_call.1} parent=1 // pred_check
      _
    $region23: #{tpu_custom_call.1} parent=1 // pred_check_branch
      %307 = sbr.rel (0) target = $region25
    $region24: #{tpu_custom_call.1} parent=1 // pred_region
      %308 = dma.done [#allocation4], 64
    $region25: #{tpu_custom_call.1} parent=1 // pred_fallthru
      _
    %309 = vsyncpa [#allocation3], 1
    %310 = vsyncpa [#allocation6], 1
    %311 = vsyncpa [#allocation4], 1

</llo_original>
